<compile_context>
chip_gen: v5e
topology: v5e:2x2
jax: 0.10.0
libtpu: 0.0.40
codegen_flags: <defaults>
</compile_context>

<pallas_src>
import math

import jax
import jax.numpy as jnp
from jax.experimental import pallas as pl
from jax.experimental.pallas import tpu as pltpu


# ---------------------------------------------------------------------------
# Kernel: fused residual 2-layer MLP on one tile of rows
# ---------------------------------------------------------------------------
def _adapter_kernel(x_ref, w1_ref, b1_ref, w2_ref, b2_ref, o_ref):
    # x: (tile_m, C) in the caller's native dtype; w1: (C, mid) bf16;
    # w2: (mid, C) bf16; biases f32.
    x = x_ref[...]
    xb = x.astype(jnp.bfloat16)
    h = jnp.dot(xb, w1_ref[...], preferred_element_type=jnp.float32) + b1_ref[...]
    h = jnp.maximum(h, 0.0)                                          # ReLU
    y = jnp.dot(h.astype(jnp.bfloat16), w2_ref[...],
                preferred_element_type=jnp.float32)
    out = x.astype(jnp.float32) + y + b2_ref[...]                    # residual (f32)
    o_ref[...] = out.astype(o_ref.dtype)


# ---------------------------------------------------------------------------
# Tile-size heuristic
# ---------------------------------------------------------------------------
def _round_up(v, mult):
    return -(-v // mult) * mult


def _pick_tile_m(m):
    """Large tiles for the HBM-bound roofline (knee ~512-1024 rows), but keep
    >= 2 grid steps when possible (v7x megacore) and stay sublane-aligned."""
    if m <= 8:
        return _round_up(max(m, 1), 8)
    half = _round_up(pl.cdiv(m, 2), 8)       # at least two tiles of work
    return min(1024, half)                   # 1024x128 f32 tile = 512 KiB


# ---------------------------------------------------------------------------
# Wrapper
# ---------------------------------------------------------------------------
def adapter_forward(features, params, *, tile_m=None):
    """features: (..., C).  params: w1 (C, mid), b1 (mid,), w2 (mid, C), b2 (C,)."""
    orig_shape = features.shape
    c = orig_shape[-1]
    x = features.reshape(-1, c)               # native dtype, no extra HBM pass
    m = x.shape[0]
    if tile_m is None:
        tile_m = _pick_tile_m(m)

    w1 = params["w1"].astype(jnp.bfloat16)                           # (C, mid)
    w2 = params["w2"].astype(jnp.bfloat16)                           # (mid, C)
    b1 = params["b1"].reshape(1, -1).astype(jnp.float32)             # (1, mid)
    b2 = params["b2"].reshape(1, -1).astype(jnp.float32)             # (1, C)
    mid = w1.shape[1]

    # Ragged M: let Pallas mask the partial edge block (rows are independent).
    grid = (pl.cdiv(m, tile_m),)

    itemsize = jnp.dtype(features.dtype).itemsize
    cost = pl.CostEstimate(
        flops=4 * m * c * mid,                # two matmuls: 2*M*C*mid each
        transcendentals=0,
        bytes_accessed=2 * m * c * itemsize + 2 * c * mid * 2,
    )

    out = pl.pallas_call(
        _adapter_kernel,
        grid=grid,
        in_specs=[
            pl.BlockSpec((tile_m, c), lambda i: (i, 0)),             # x tile
            pl.BlockSpec((c, mid),   lambda i: (0, 0)),              # w1 (resident)
            pl.BlockSpec((1, mid),   lambda i: (0, 0)),              # b1
            pl.BlockSpec((mid, c),   lambda i: (0, 0)),              # w2
            pl.BlockSpec((1, c),     lambda i: (0, 0)),              # b2
        ],
        out_specs=pl.BlockSpec((tile_m, c), lambda i: (i, 0)),
        out_shape=jax.ShapeDtypeStruct((m, c), features.dtype),
        compiler_params=pltpu.CompilerParams(
            dimension_semantics=("parallel",)),                      # megacore split
        cost_estimate=cost,
    )(x, w1, b1, w2, b2)

    return out.reshape(orig_shape)


# ---------------------------------------------------------------------------
# Pure-JAX (f32) reference matching the torch module semantics
# ---------------------------------------------------------------------------
def adapter_reference(features, params):
    x = features.astype(jnp.float32)
    hp = jax.lax.Precision.HIGHEST
    h = jnp.maximum(jnp.dot(x, params["w1"], precision=hp) + params["b1"], 0.0)
    y = jnp.dot(h, params["w2"], precision=hp) + params["b2"]
    return x + y


# ---------------------------------------------------------------------------
def init_params(key, c, mid):
    """torch.nn.Linear default init: U(-1/sqrt(fan_in), 1/sqrt(fan_in))."""
    k1, k2, k3, k4 = jax.random.split(key, 4)
    lim1 = 1.0 / math.sqrt(c)
    lim2 = 1.0 / math.sqrt(mid)
    return {
        "w1": jax.random.uniform(k1, (c, mid), jnp.float32, -lim1, lim1),
        "b1": jax.random.uniform(k2, (mid,), jnp.float32, -lim1, lim1),
        "w2": jax.random.uniform(k3, (mid, c), jnp.float32, -lim2, lim2),
        "b2": jax.random.uniform(k4, (c,), jnp.float32, -lim2, lim2),
    }


# ---------------------------------------------------------------------------
if __name__ == "__main__":
    B, H, W, C = 2, 16, 16, 128     # features layout typical of SAM adapters
    MID = 32                        # mid_dim (= C // 4)

    key = jax.random.PRNGKey(0)
    k_x, k_p = jax.random.split(key)
    features = jax.random.normal(k_x, (B, H, W, C), jnp.float32)
    params = init_params(k_p, C, MID)

    out = adapter_forward(features, params)
    out = jax.block_until_ready(out)

    assert out.shape == features.shape
    assert out.dtype == features.dtype
    ref = adapter_reference(features, params)
    # Tolerance accounts for intentional bf16 matmul operands vs f32 reference.
    max_diff = float(jnp.max(jnp.abs(out - ref)))
    assert max_diff < 5e-2, f"kernel/reference mismatch: {max_diff}"

    # Exercise the ragged-M (masked partial edge block) path once as well.
    feats_ragged = jax.random.normal(k_x, (3, 7, 11, C), jnp.float32)  # M=231
    out_r = jax.block_until_ready(adapter_forward(feats_ragged, params))
    ref_r = adapter_reference(feats_ragged, params)
    assert float(jnp.max(jnp.abs(out_r - ref_r))) < 5e-2

    print("KERNEL_OK")
</pallas_src>

<mosaic_0001>
module attributes {stable_mosaic.version = 11 : i64} {
  func.func @_adapter_kernel(%arg0: i32, %arg1: memref<256x128xf32, #tpu.memory_space<vmem>>, %arg2: memref<128x32xbf16, #tpu.memory_space<vmem>>, %arg3: memref<1x32xf32, #tpu.memory_space<vmem>>, %arg4: memref<32x128xbf16, #tpu.memory_space<vmem>>, %arg5: memref<1x128xf32, #tpu.memory_space<vmem>>, %arg6: memref<256x128xf32, #tpu.memory_space<vmem>>) attributes {dimension_semantics = [#tpu.dimension_semantics<parallel>], iteration_bounds = array<i64: 2>, scalar_prefetch = 0 : i64, scratch_operands = 0 : i64, tpu.core_type = #tpu.core_type<tc>, window_params = [{transform_indices = @transform_0, window_bounds = array<i64: 256, 128>}, {pipeline_mode = #tpu.pipeline_mode<synchronous>, transform_indices = @transform_1, window_bounds = array<i64: 128, 32>}, {pipeline_mode = #tpu.pipeline_mode<synchronous>, transform_indices = @transform_2, window_bounds = array<i64: 1, 32>}, {pipeline_mode = #tpu.pipeline_mode<synchronous>, transform_indices = @transform_3, window_bounds = array<i64: 32, 128>}, {pipeline_mode = #tpu.pipeline_mode<synchronous>, transform_indices = @transform_4, window_bounds = array<i64: 1, 128>}, {transform_indices = @transform_5, window_bounds = array<i64: 256, 128>}]} {
    %c0 = arith.constant 0 : index
    %c0_0 = arith.constant 0 : index
    %0 = vector.load %arg1[%c0, %c0_0] : memref<256x128xf32, #tpu.memory_space<vmem>>, vector<256x128xf32>
    %1 = arith.truncf %0 : vector<256x128xf32> to vector<256x128xbf16>
    %c0_1 = arith.constant 0 : index
    %c0_2 = arith.constant 0 : index
    %2 = vector.load %arg2[%c0_1, %c0_2] : memref<128x32xbf16, #tpu.memory_space<vmem>>, vector<128x32xbf16>
    %cst = arith.constant dense<0.000000e+00> : vector<256x32xf32>
    %3 = tpu.matmul %1, %2, %cst {dimension_numbers = #tpu.dot_dimension_numbers<[1], [0], [0], [1], [0, 0, 1, 1], [], []>} : vector<256x128xbf16>, vector<128x32xbf16>, vector<256x32xf32> -> vector<256x32xf32>
    %c0_3 = arith.constant 0 : index
    %c0_4 = arith.constant 0 : index
    %4 = vector.load %arg3[%c0_3, %c0_4] : memref<1x32xf32, #tpu.memory_space<vmem>>, vector<1x32xf32>
    %5 = vector.broadcast %4 : vector<1x32xf32> to vector<256x32xf32>
    %6 = arith.addf %3, %5 : vector<256x32xf32>
    %cst_5 = arith.constant 0.000000e+00 : f32
    %7 = vector.broadcast %cst_5 : f32 to vector<256x32xf32>
    %8 = arith.maximumf %6, %7 : vector<256x32xf32>
    %9 = arith.truncf %8 : vector<256x32xf32> to vector<256x32xbf16>
    %c0_6 = arith.constant 0 : index
    %c0_7 = arith.constant 0 : index
    %10 = vector.load %arg4[%c0_6, %c0_7] : memref<32x128xbf16, #tpu.memory_space<vmem>>, vector<32x128xbf16>
    %cst_8 = arith.constant dense<0.000000e+00> : vector<256x128xf32>
    %11 = tpu.matmul %9, %10, %cst_8 {dimension_numbers = #tpu.dot_dimension_numbers<[1], [0], [0], [1], [0, 0, 1, 1], [], []>} : vector<256x32xbf16>, vector<32x128xbf16>, vector<256x128xf32> -> vector<256x128xf32>
    %12 = arith.addf %0, %11 : vector<256x128xf32>
    %c0_9 = arith.constant 0 : index
    %c0_10 = arith.constant 0 : index
    %13 = vector.load %arg5[%c0_9, %c0_10] : memref<1x128xf32, #tpu.memory_space<vmem>>, vector<1x128xf32>
    %14 = vector.broadcast %13 : vector<1x128xf32> to vector<256x128xf32>
    %15 = arith.addf %12, %14 : vector<256x128xf32>
    %c0_11 = arith.constant 0 : index
    %c0_12 = arith.constant 0 : index
    %16 = vector.load %arg6[%c0_11, %c0_12] : memref<256x128xf32, #tpu.memory_space<vmem>>, vector<256x128xf32>
    tpu.vector_store %arg6[%c0_11, %c0_12], %15 {strides = array<i32>} : memref<256x128xf32, #tpu.memory_space<vmem>>, vector<256x128xf32>,
    return
  }
  func.func @transform_0(%arg0: i32) -> (i32, i32) {
    %c0_i32 = arith.constant 0 : i32
    %c0_i32_0 = arith.constant 0 : i32
    return %arg0, %c0_i32 : i32, i32
  }
  func.func @transform_1(%arg0: i32) -> (i32, i32) {
    %c0_i32 = arith.constant 0 : i32
    %c0_i32_0 = arith.constant 0 : i32
    %c0_i32_1 = arith.constant 0 : i32
    return %c0_i32, %c0_i32_0 : i32, i32
  }
  func.func @transform_2(%arg0: i32) -> (i32, i32) {
    %c0_i32 = arith.constant 0 : i32
    %c0_i32_0 = arith.constant 0 : i32
    %c0_i32_1 = arith.constant 0 : i32
    return %c0_i32, %c0_i32_0 : i32, i32
  }
  func.func @transform_3(%arg0: i32) -> (i32, i32) {
    %c0_i32 = arith.constant 0 : i32
    %c0_i32_0 = arith.constant 0 : i32
    %c0_i32_1 = arith.constant 0 : i32
    return %c0_i32, %c0_i32_0 : i32, i32
  }
  func.func @transform_4(%arg0: i32) -> (i32, i32) {
    %c0_i32 = arith.constant 0 : i32
    %c0_i32_0 = arith.constant 0 : i32
    %c0_i32_1 = arith.constant 0 : i32
    return %c0_i32, %c0_i32_0 : i32, i32
  }
  func.func @transform_5(%arg0: i32) -> (i32, i32) {
    %c0_i32 = arith.constant 0 : i32
    %c0_i32_0 = arith.constant 0 : i32
    return %arg0, %c0_i32 : i32, i32
  }
}

</mosaic_0001>

<llo_original>
// kernel: tpu_custom_call.1
$region0: #{tpu_custom_call.1}
  #allocation0 [shape = 'u32[]', space=smem, size = 0x4, offset = 0x4, fixed_abs, tag = 'smem constant byte address 0x4 - core index']
  #allocation1 [shape = 'u32[72,128]{1,0:T(1,128)}', space=vmem, size = 0x9000, scoped, tag = 'internal scratch']
  %s0 = inlined_call_operand.hbm [shape: f32[512,128], index: 0, kind: input, shape index: {}]
  %s1 = inlined_call_operand.vmem [shape: bf16[128,32], index: 1, kind: input, shape index: {}]
  %s2 = inlined_call_operand.vmem [shape: f32[1,32], index: 2, kind: input, shape index: {}]
  %s3 = inlined_call_operand.vmem [shape: bf16[32,128], index: 3, kind: input, shape index: {}]
  %s4 = inlined_call_operand.vmem [shape: f32[1,128], index: 4, kind: input, shape index: {}]
  %s5 = inlined_call_operand.hbm [shape: f32[512,128], index: 5, kind: output, shape index: {}]
  %s6 = sld [smem:[#allocation0]]
  $region57: #{tpu_custom_call.1} parent=0
    _
  %s8 = ssub.s32 1, %s6
  %s9 = scalar_select 0, %s8, %s6
  $region1: #{tpu_custom_call.1} parent=0
    #allocation2 [shape = 'u8[262144]{0}', space=vmem, size = 0x40000, scoped, tag = 'input window, operand 0']
    #allocation3 [shape = 's32[2]{0}', space=sflag, size = 0x8, scoped, tag = 'scoped memory for tpu_custom_call.1']
    #allocation4 [shape = 's32[2]{0}', space=sflag, size = 0x8, scoped, tag = 'scoped memory for tpu_custom_call.1']
    #allocation5 [shape = 'u8[262144]{0}', space=vmem, size = 0x40000, scoped, tag = 'output window, operand 0']
    %10 = vsyncpa [#allocation3], 0
    %s11 = scalar_lea.sflag [#allocation3], 1
    %12 = vsyncpa %s11, 0
    %13 = vsyncpa [#allocation4], 0
    %s14 = scalar_lea.sflag [#allocation4], 1
    %15 = vsyncpa %s14, 0
    loop: start=0, step=1, limit=4
    $region2: #{tpu_custom_call.1} parent=1 // loop_pre_header
      _
    $region3: #{tpu_custom_call.1} parent=1 // loop_header
      %s17 = sphi 0, %s21
      %p18 = scmp.ge.s32.totalorder %s17, 4
      %s27 = sphi 0, %s29
      %s30 = sphi 0, %s27
      %s31 = sphi 0, %s30
      %s47 = sphi 0, %s31
      %s51 = sphi 0, %s51
      %s53 = sphi 0, %s51
      %s54 = sphi 0, %s53
      %s68 = sphi 0, %s54
      %s72 = sphi 0, %s72
      %s74 = sphi 0, %s72
      %s75 = sphi 0, %s74
      %s89 = sphi 0, %s75
      %s93 = sphi 0, %s93
      %s95 = sphi 0, %s93
      %s96 = sphi 0, %s95
      %s110 = sphi 0, %s96
      %s114 = sphi 0, %s114
      %s116 = sphi 0, %s114
      %s117 = sphi 0, %s116
      %s131 = sphi 0, %s117
      %s137 = sphi 0, %s139
      %s140 = sphi 0, %s137
      %s141 = sphi 0, %s140
      %s157 = sphi 0, %s141
    $region4: #{tpu_custom_call.1} parent=1 // loop_header_branch
      %20 = sbr.rel (%p18) target = $region8
    $region5: #{tpu_custom_call.1} parent=1 // loop_body
      %s22 = ssub.s32 %s17, 1
      %s23 = ssub.s32 %s17, 2
      %s24 = sadd.s32 %s17, 1
      %s25 = ssub.s32 %s17, %s24
      %p26 = scmp.eq.s32.totalorder %s25, 0
      %s28 = sadd.s32 %s27, 1
      %s29 = scalar_select %p26, %s27, %s28
      %p32 = pneg %p26
      %p33 = scmp.eq.s32.totalorder %s17, 1
      %p34 = por %p32, %p33
      %p35 = scmp.ne.s32.totalorder %s27, %s30
      %p36 = scmp.eq.s32.totalorder %s17, 0
      %p37 = por %p35, %p36
      %p38 = scmp.ne.s32.totalorder %s27, %s30
      %p39 = scmp.eq.s32.totalorder %s22, 1
      %p40 = por %p38, %p39
      %p41 = scmp.ne.s32.totalorder %s30, %s31
      %p42 = scmp.eq.s32.totalorder %s22, 0
      %p43 = por %p41, %p42
      %p44 = scmp.ne.s32.totalorder %s30, %s31
      %p45 = scmp.eq.s32.totalorder %s23, 1
      %p46 = por %p44, %p45
      %p48 = scmp.ne.s32.totalorder %s31, %s47
      %p49 = scmp.eq.s32.totalorder %s23, 0
      %p50 = por %p48, %p49
      %s52 = sadd.s32 %s51, 1
      %p55 = scmp.eq.s32.totalorder %s17, 1
      %p56 = scmp.ne.s32.totalorder %s51, %s53
      %p57 = scmp.eq.s32.totalorder %s17, 0
      %p58 = por %p56, %p57
      %p59 = scmp.ne.s32.totalorder %s51, %s53
      %p60 = scmp.eq.s32.totalorder %s22, 1
      %p61 = por %p59, %p60
      %p62 = scmp.ne.s32.totalorder %s53, %s54
      %p63 = scmp.eq.s32.totalorder %s22, 0
      %p64 = por %p62, %p63
      %p65 = scmp.ne.s32.totalorder %s53, %s54
      %p66 = scmp.eq.s32.totalorder %s23, 1
      %p67 = por %p65, %p66
      %p69 = scmp.ne.s32.totalorder %s54, %s68
      %p70 = scmp.eq.s32.totalorder %s23, 0
      %p71 = por %p69, %p70
      %s73 = sadd.s32 %s72, 1
      %p76 = scmp.eq.s32.totalorder %s17, 1
      %p77 = scmp.ne.s32.totalorder %s72, %s74
      %p78 = scmp.eq.s32.totalorder %s17, 0
      %p79 = por %p77, %p78
      %p80 = scmp.ne.s32.totalorder %s72, %s74
      %p81 = scmp.eq.s32.totalorder %s22, 1
      %p82 = por %p80, %p81
      %p83 = scmp.ne.s32.totalorder %s74, %s75
      %p84 = scmp.eq.s32.totalorder %s22, 0
      %p85 = por %p83, %p84
      %p86 = scmp.ne.s32.totalorder %s74, %s75
      %p87 = scmp.eq.s32.totalorder %s23, 1
      %p88 = por %p86, %p87
      %p90 = scmp.ne.s32.totalorder %s75, %s89
      %p91 = scmp.eq.s32.totalorder %s23, 0
      %p92 = por %p90, %p91
      %s94 = sadd.s32 %s93, 1
      %p97 = scmp.eq.s32.totalorder %s17, 1
      %p98 = scmp.ne.s32.totalorder %s93, %s95
      %p99 = scmp.eq.s32.totalorder %s17, 0
      %p100 = por %p98, %p99
      %p101 = scmp.ne.s32.totalorder %s93, %s95
      %p102 = scmp.eq.s32.totalorder %s22, 1
      %p103 = por %p101, %p102
      %p104 = scmp.ne.s32.totalorder %s95, %s96
      %p105 = scmp.eq.s32.totalorder %s22, 0
      %p106 = por %p104, %p105
      %p107 = scmp.ne.s32.totalorder %s95, %s96
      %p108 = scmp.eq.s32.totalorder %s23, 1
      %p109 = por %p107, %p108
      %p111 = scmp.ne.s32.totalorder %s96, %s110
      %p112 = scmp.eq.s32.totalorder %s23, 0
      %p113 = por %p111, %p112
      %s115 = sadd.s32 %s114, 1
      %p118 = scmp.eq.s32.totalorder %s17, 1
      %p119 = scmp.ne.s32.totalorder %s114, %s116
      %p120 = scmp.eq.s32.totalorder %s17, 0
      %p121 = por %p119, %p120
      %p122 = scmp.ne.s32.totalorder %s114, %s116
      %p123 = scmp.eq.s32.totalorder %s22, 1
      %p124 = por %p122, %p123
      %p125 = scmp.ne.s32.totalorder %s116, %s117
      %p126 = scmp.eq.s32.totalorder %s22, 0
      %p127 = por %p125, %p126
      %p128 = scmp.ne.s32.totalorder %s116, %s117
      %p129 = scmp.eq.s32.totalorder %s23, 1
      %p130 = por %p128, %p129
      %p132 = scmp.ne.s32.totalorder %s117, %s131
      %p133 = scmp.eq.s32.totalorder %s23, 0
      %p134 = por %p132, %p133
      %s135 = ssub.s32 %s17, %s24
      %p136 = scmp.eq.s32.totalorder %s135, 0
      %s138 = sadd.s32 %s137, 1
      %s139 = scalar_select %p136, %s137, %s138
      %p142 = pneg %p136
      %p143 = scmp.eq.s32.totalorder %s17, 1
      %p144 = por %p142, %p143
      %p145 = scmp.ne.s32.totalorder %s137, %s140
      %p146 = scmp.eq.s32.totalorder %s17, 0
      %p147 = por %p145, %p146
      %p148 = scmp.ne.s32.totalorder %s137, %s140
      %p149 = scmp.eq.s32.totalorder %s22, 1
      %p150 = por %p148, %p149
      %p151 = scmp.ne.s32.totalorder %s140, %s141
      %p152 = scmp.eq.s32.totalorder %s22, 0
      %p153 = por %p151, %p152
      %p154 = scmp.ne.s32.totalorder %s140, %s141
      %p155 = scmp.eq.s32.totalorder %s23, 1
      %p156 = por %p154, %p155
      %p158 = scmp.ne.s32.totalorder %s141, %s157
      %p159 = scmp.eq.s32.totalorder %s23, 0
      %p160 = por %p158, %p159
      %p161 = scmp.le.s32.totalorder 1, %s17
      %p162 = scmp.lt.s32.totalorder %s17, 3
      %p163 = pnand %p161, %p162
      %p164 = pneg %p163
      // Predicated region
      $region9: #{tpu_custom_call.1} parent=5 // pred_check
        _
      $region10: #{tpu_custom_call.1} parent=5 // pred_check_branch
        %166 = sbr.rel (%p163) target = $region12
      $region11: #{tpu_custom_call.1} parent=5 // pred_region
        %s167 = ssub.s32 %s17, 1
        // Predicated region
        $region13: #{tpu_custom_call.1} parent=11 // pred_check
          %p168 = pneg %p64
        $region14: #{tpu_custom_call.1} parent=11 // pred_check_branch
          %170 = sbr.rel (%p168) target = $region16
        $region15: #{tpu_custom_call.1} parent=11 // pred_region
          _
        $region16: #{tpu_custom_call.1} parent=11 // pred_fallthru
          _
        // Predicated region
        $region17: #{tpu_custom_call.1} parent=11 // pred_check
          %p171 = pneg %p85
        $region18: #{tpu_custom_call.1} parent=11 // pred_check_branch
          %173 = sbr.rel (%p171) target = $region20
        $region19: #{tpu_custom_call.1} parent=11 // pred_region
          _
        $region20: #{tpu_custom_call.1} parent=11 // pred_fallthru
          _
        // Predicated region
        $region21: #{tpu_custom_call.1} parent=11 // pred_check
          %p174 = pneg %p106
        $region22: #{tpu_custom_call.1} parent=11 // pred_check_branch
          %176 = sbr.rel (%p174) target = $region24
        $region23: #{tpu_custom_call.1} parent=11 // pred_region
          _
        $region24: #{tpu_custom_call.1} parent=11 // pred_fallthru
          _
        // Predicated region
        $region25: #{tpu_custom_call.1} parent=11 // pred_check
          %p177 = pneg %p127
        $region26: #{tpu_custom_call.1} parent=11 // pred_check_branch
          %179 = sbr.rel (%p177) target = $region28
        $region27: #{tpu_custom_call.1} parent=11 // pred_region
          _
        $region28: #{tpu_custom_call.1} parent=11 // pred_fallthru
          _
      $region12: #{tpu_custom_call.1} parent=5 // pred_fallthru
        _
      %p180 = scmp.lt.s32.totalorder %s17, 2
      // Predicated region
      $region29: #{tpu_custom_call.1} parent=5 // pred_check
        %p181 = pneg %p180
      $region30: #{tpu_custom_call.1} parent=5 // pred_check_branch
        %183 = sbr.rel (%p181) target = $region32
      $region31: #{tpu_custom_call.1} parent=5 // pred_region
        // Predicated region
        $region33: #{tpu_custom_call.1} parent=31 // pred_check
          %p184 = pneg %p37
        $region34: #{tpu_custom_call.1} parent=31 // pred_check_branch
          %186 = sbr.rel (%p184) target = $region36
        $region35: #{tpu_custom_call.1} parent=31 // pred_region
          %s187 = sand.u32 %s27, 1
          %s188 = scalar_lea.sflag [#allocation3], %s187
          %s189 = sand.u32 %s27, 1
          %s190 = smul.addr %s189, 256
          %s191 = scalar_lea.vmem [#allocation2], %s190
          %s192 = smul.u32 32, %s17
          %194 = vsyncadd %s188, 0
          %s195 = smul.addr %s192, 8
          %s196 = scalar_lea.hbm %s0, %s195
          %s197 = sshll.u32 %s196, 4
          %s198 = int_to_ptr.hbm [resolvable:$true] %s197
          %s199 = sshll.u32 %s191, 4
          %s200 = int_to_ptr.vmem [resolvable:$true] %s199
          %205 = dma.hbm_to_vmem [thread:$0]  %s198, 4096, %s200, %s188, 128, 128, 8
        $region36: #{tpu_custom_call.1} parent=31 // pred_fallthru
          _
      $region32: #{tpu_custom_call.1} parent=5 // pred_fallthru
        _
      %p206 = scmp.le.s32.totalorder 1, %s17
      %p207 = scmp.lt.s32.totalorder %s17, 3
      %p208 = pnand %p206, %p207
      %p209 = pneg %p208
      // Predicated region
      $region37: #{tpu_custom_call.1} parent=5 // pred_check
        _
      $region38: #{tpu_custom_call.1} parent=5 // pred_check_branch
        %211 = sbr.rel (%p208) target = $region40
      $region39: #{tpu_custom_call.1} parent=5 // pred_region
        %s212 = ssub.s32 %s17, 1
        %s213 = sand.u32 %s30, 1
        %s214 = scalar_lea.sflag [#allocation3], %s213
        %s215 = sand.u32 %s30, 1
        %s216 = smul.addr %s215, 256
        %s217 = scalar_lea.vmem [#allocation2], %s216
        // Predicated region
        $region41: #{tpu_custom_call.1} parent=39 // pred_check
          %p218 = pneg %p43
        $region42: #{tpu_custom_call.1} parent=39 // pred_check_branch
          %220 = sbr.rel (%p218) target = $region44
        $region43: #{tpu_custom_call.1} parent=39 // pred_region
          %222 = dma.done %s214, 4096
        $region44: #{tpu_custom_call.1} parent=39 // pred_fallthru
          _
        %s223 = sand.u32 %s30, 1
        %s224 = scalar_lea.sflag [#allocation3], %s223
        %s225 = sand.u32 %s30, 1
        %s226 = smul.addr %s225, 256
        %s227 = scalar_lea.vmem [#allocation2], %s226
        %p228 = pneg %p43
        %p229 = pneg %p40
        %p230 = pneg %p64
        %p231 = pneg %p61
        %p232 = pneg %p85
        %p233 = pneg %p82
        %p234 = pneg %p106
        %p235 = pneg %p103
        %p236 = pneg %p127
        %p237 = pneg %p124
        %p238 = pneg %p153
        %p239 = pneg %p150
        %s240 = sand.u32 %s140, 1
        %s241 = scalar_lea.sflag [#allocation4], %s240
        %s242 = sand.u32 %s140, 1
        %s243 = smul.addr %s242, 256
        %s244 = scalar_lea.vmem [#allocation5], %s243
        %s245 = smul.u32 32, %s22
        %s246 = smul.u32 32, %s22
        %v248 = vld [vmem:[%s217] sm:$0xff]
        %v249 = vld [vmem:[%s217 + $0x8] sm:$0xff]
        %v250 = vld [vmem:[%s217 + $0x10] sm:$0xff]
        %v251 = vld [vmem:[%s217 + $0x18] sm:$0xff]
        %v252 = vld [vmem:[%s217 + $0x20] sm:$0xff]
        %v253 = vld [vmem:[%s217 + $0x28] sm:$0xff]
        %v254 = vld [vmem:[%s217 + $0x30] sm:$0xff]
        %v255 = vld [vmem:[%s217 + $0x38] sm:$0xff]
        %v256 = vld [vmem:[%s217 + $0x40] sm:$0xff]
        %v257 = vld [vmem:[%s217 + $0x48] sm:$0xff]
        %v258 = vld [vmem:[%s217 + $0x50] sm:$0xff]
        %v259 = vld [vmem:[%s217 + $0x58] sm:$0xff]
        %v260 = vld [vmem:[%s217 + $0x60] sm:$0xff]
        %v261 = vld [vmem:[%s217 + $0x68] sm:$0xff]
        %v262 = vld [vmem:[%s217 + $0x70] sm:$0xff]
        %v263 = vld [vmem:[%s217 + $0x78] sm:$0xff]
        %v264 = vld [vmem:[%s217 + $0x80] sm:$0xff]
        %v265 = vld [vmem:[%s217 + $0x88] sm:$0xff]
        %v266 = vld [vmem:[%s217 + $0x90] sm:$0xff]
        %v267 = vld [vmem:[%s217 + $0x98] sm:$0xff]
        %v268 = vld [vmem:[%s217 + $0xa0] sm:$0xff]
        %v269 = vld [vmem:[%s217 + $0xa8] sm:$0xff]
        %v270 = vld [vmem:[%s217 + $0xb0] sm:$0xff]
        %v271 = vld [vmem:[%s217 + $0xb8] sm:$0xff]
        %v272 = vld [vmem:[%s217 + $0xc0] sm:$0xff]
        %v273 = vld [vmem:[%s217 + $0xc8] sm:$0xff]
        %v274 = vld [vmem:[%s217 + $0xd0] sm:$0xff]
        %v275 = vld [vmem:[%s217 + $0xd8] sm:$0xff]
        %v276 = vld [vmem:[%s217 + $0xe0] sm:$0xff]
        %v277 = vld [vmem:[%s217 + $0xe8] sm:$0xff]
        %v278 = vld [vmem:[%s217 + $0xf0] sm:$0xff]
        %v279 = vld [vmem:[%s217 + $0xf8] sm:$0xff]
        %v280 = vpack.c.bf16 %v249, %v248
        %v281 = vpack.c.bf16 %v251, %v250
        %v282 = vpack.c.bf16 %v253, %v252
        %v283 = vpack.c.bf16 %v255, %v254
        %v284 = vpack.c.bf16 %v257, %v256
        %v285 = vpack.c.bf16 %v259, %v258
        %v286 = vpack.c.bf16 %v261, %v260
        %v287 = vpack.c.bf16 %v263, %v262
        %v288 = vpack.c.bf16 %v265, %v264
        %v289 = vpack.c.bf16 %v267, %v266
        %v290 = vpack.c.bf16 %v269, %v268
        %v291 = vpack.c.bf16 %v271, %v270
        %v292 = vpack.c.bf16 %v273, %v272
        %v293 = vpack.c.bf16 %v275, %v274
        %v294 = vpack.c.bf16 %v277, %v276
        %v295 = vpack.c.bf16 %v279, %v278
        %v296 = vld [vmem:[%s1] sm:$0xf]
        %v297 = vld [vmem:[%s1 + $0x4] sm:$0xf]
        %v298 = vld [vmem:[%s1 + $0x8] sm:$0xf]
        %v299 = vld [vmem:[%s1 + $0xc] sm:$0xf]
        %v300 = vld [vmem:[%s1 + $0x10] sm:$0xf]
        %v301 = vld [vmem:[%s1 + $0x14] sm:$0xf]
        %v302 = vld [vmem:[%s1 + $0x18] sm:$0xf]
        %v303 = vld [vmem:[%s1 + $0x1c] sm:$0xf]
        %v304 = vld [vmem:[%s1 + $0x20] sm:$0xf]
        %v305 = vld [vmem:[%s1 + $0x24] sm:$0xf]
        %v306 = vld [vmem:[%s1 + $0x28] sm:$0xf]
        %v307 = vld [vmem:[%s1 + $0x2c] sm:$0xf]
        %v308 = vld [vmem:[%s1 + $0x30] sm:$0xf]
        %v309 = vld [vmem:[%s1 + $0x34] sm:$0xf]
        %v310 = vld [vmem:[%s1 + $0x38] sm:$0xf]
        %v311 = vld [vmem:[%s1 + $0x3c] sm:$0xf]
        %v312 = vld [vmem:[%s2] sm:$0x1]
        %v314 = vperm.slane %v312, 0
        %v332 = vunpack.c.l.b16 %v296
        %v333 = vunpack.c.l.b16 %v297
        %v334 = vunpack.c.l.b16 %v298
        %v335 = vunpack.c.l.b16 %v299
        %v336 = vunpack.c.l.b16 %v300
        %v337 = vunpack.c.l.b16 %v301
        %v338 = vunpack.c.l.b16 %v302
        %v339 = vunpack.c.l.b16 %v303
        %v340 = vunpack.c.l.b16 %v304
        %v341 = vunpack.c.l.b16 %v305
        %v342 = vunpack.c.l.b16 %v306
        %v343 = vunpack.c.l.b16 %v307
        %v344 = vunpack.c.l.b16 %v308
        %v345 = vunpack.c.l.b16 %v309
        %v346 = vunpack.c.l.b16 %v310
        %v347 = vunpack.c.l.b16 %v311
        %v348 = vpack.c.b16 %v333, %v332
        %v349 = vpack.c.b16 %v335, %v334
        %v350 = vpack.c.b16 %v337, %v336
        %v351 = vpack.c.b16 %v339, %v338
        %v352 = vpack.c.b16 %v341, %v340
        %v353 = vpack.c.b16 %v343, %v342
        %v354 = vpack.c.b16 %v345, %v344
        %v355 = vpack.c.b16 %v347, %v346
        %364 = vmatpush.bf16.msra.mxu0 %v355
        %365 = vmatpush.bf16.msra.mxu0 %v354
        %366 = vmatpush.bf16.msra.mxu0 %v353
        %367 = vmatpush.bf16.msra.mxu0 %v352
        %368 = vmatpush.bf16.msra.mxu0 %v351
        %369 = vmatpush.bf16.msra.mxu0 %v350
        %370 = vmatpush.bf16.msra.mxu0 %v349
        %371 = vmatpush.bf16.msra.mxu0 %v348
        %372 = vmatmul.bf16.gmra.mxu0 %v280
        %v373 = vpop.f32.mrf.mxu0
        %v374 = vadd.f32 %v314, %v373
        %v375 = vpop.f32.mrf.mxu0
        %v376 = vadd.f32 %v314, %v375
        %377 = vmatmul.bf16.gmra.mxu0 %v281
        %v378 = vpop.f32.mrf.mxu0
        %v379 = vadd.f32 %v314, %v378
        %v380 = vpop.f32.mrf.mxu0
        %v381 = vadd.f32 %v314, %v380
        %382 = vmatmul.bf16.gmra.mxu0 %v282
        %v383 = vpop.f32.mrf.mxu0
        %v384 = vadd.f32 %v314, %v383
        %v385 = vpop.f32.mrf.mxu0
        %v386 = vadd.f32 %v314, %v385
        %387 = vmatmul.bf16.gmra.mxu0 %v283
        %v388 = vpop.f32.mrf.mxu0
        %v389 = vadd.f32 %v314, %v388
        %v390 = vpop.f32.mrf.mxu0
        %v391 = vadd.f32 %v314, %v390
        %392 = vmatmul.bf16.gmra.mxu0 %v284
        %v393 = vpop.f32.mrf.mxu0
        %v394 = vadd.f32 %v314, %v393
        %v395 = vpop.f32.mrf.mxu0
        %v396 = vadd.f32 %v314, %v395
        %397 = vmatmul.bf16.gmra.mxu0 %v285
        %v398 = vpop.f32.mrf.mxu0
        %v399 = vadd.f32 %v314, %v398
        %v400 = vpop.f32.mrf.mxu0
        %v401 = vadd.f32 %v314, %v400
        %402 = vmatmul.bf16.gmra.mxu0 %v286
        %v403 = vpop.f32.mrf.mxu0
        %v404 = vadd.f32 %v314, %v403
        %v405 = vpop.f32.mrf.mxu0
        %v406 = vadd.f32 %v314, %v405
        %407 = vmatmul.bf16.gmra.mxu0 %v287
        %v408 = vpop.f32.mrf.mxu0
        %v409 = vadd.f32 %v314, %v408
        %v410 = vpop.f32.mrf.mxu0
        %v411 = vadd.f32 %v314, %v410
        %412 = vmatmul.bf16.gmra.mxu0 %v288
        %v413 = vpop.f32.mrf.mxu0
        %v414 = vadd.f32 %v314, %v413
        %v415 = vpop.f32.mrf.mxu0
        %v416 = vadd.f32 %v314, %v415
        %417 = vmatmul.bf16.gmra.mxu0 %v289
        %v418 = vpop.f32.mrf.mxu0
        %v419 = vadd.f32 %v314, %v418
        %v420 = vpop.f32.mrf.mxu0
        %v421 = vadd.f32 %v314, %v420
        %422 = vmatmul.bf16.gmra.mxu0 %v290
        %v423 = vpop.f32.mrf.mxu0
        %v424 = vadd.f32 %v314, %v423
        %v425 = vpop.f32.mrf.mxu0
        %v426 = vadd.f32 %v314, %v425
        %427 = vmatmul.bf16.gmra.mxu0 %v291
        %v428 = vpop.f32.mrf.mxu0
        %v429 = vadd.f32 %v314, %v428
        %v430 = vpop.f32.mrf.mxu0
        %v431 = vadd.f32 %v314, %v430
        %432 = vmatmul.bf16.gmra.mxu0 %v292
        %v433 = vpop.f32.mrf.mxu0
        %v434 = vadd.f32 %v314, %v433
        %v435 = vpop.f32.mrf.mxu0
        %v436 = vadd.f32 %v314, %v435
        %437 = vmatmul.bf16.gmra.mxu0 %v293
        %v438 = vpop.f32.mrf.mxu0
        %v439 = vadd.f32 %v314, %v438
        %v440 = vpop.f32.mrf.mxu0
        %v441 = vadd.f32 %v314, %v440
        %442 = vmatmul.bf16.gmra.mxu0 %v294
        %v443 = vpop.f32.mrf.mxu0
        %v444 = vadd.f32 %v314, %v443
        %v445 = vpop.f32.mrf.mxu0
        %v446 = vadd.f32 %v314, %v445
        %447 = vmatmul.bf16.gmra.mxu0 %v295
        %v448 = vpop.f32.mrf.mxu0
        %v449 = vadd.f32 %v314, %v448
        %v450 = vpop.f32.mrf.mxu0
        %v451 = vadd.f32 %v314, %v450
        %452 = vdwg.mxu0
        %v453 = vmax.f32 %v374, 0.0
        %v454 = vmax.f32 %v376, 0.0
        %v455 = vmax.f32 %v379, 0.0
        %v456 = vmax.f32 %v381, 0.0
        %v457 = vmax.f32 %v384, 0.0
        %v458 = vmax.f32 %v386, 0.0
        %v459 = vmax.f32 %v389, 0.0
        %v460 = vmax.f32 %v391, 0.0
        %v461 = vmax.f32 %v394, 0.0
        %v462 = vmax.f32 %v396, 0.0
        %v463 = vmax.f32 %v399, 0.0
        %v464 = vmax.f32 %v401, 0.0
        %v465 = vmax.f32 %v404, 0.0
        %v466 = vmax.f32 %v406, 0.0
        %v467 = vmax.f32 %v409, 0.0
        %v468 = vmax.f32 %v411, 0.0
        %v469 = vmax.f32 %v414, 0.0
        %v470 = vmax.f32 %v416, 0.0
        %v471 = vmax.f32 %v419, 0.0
        %v472 = vmax.f32 %v421, 0.0
        %v473 = vmax.f32 %v424, 0.0
        %v474 = vmax.f32 %v426, 0.0
        %v475 = vmax.f32 %v429, 0.0
        %v476 = vmax.f32 %v431, 0.0
        %v477 = vmax.f32 %v434, 0.0
        %v478 = vmax.f32 %v436, 0.0
        %v479 = vmax.f32 %v439, 0.0
        %v480 = vmax.f32 %v441, 0.0
        %v481 = vmax.f32 %v444, 0.0
        %v482 = vmax.f32 %v446, 0.0
        %v483 = vmax.f32 %v449, 0.0
        %v484 = vmax.f32 %v451, 0.0
        %v485 = vpack.c.bf16 %v454, %v453
        %v486 = vpack.c.bf16 %v456, %v455
        %v487 = vpack.c.bf16 %v458, %v457
        %v488 = vpack.c.bf16 %v460, %v459
        %v489 = vpack.c.bf16 %v462, %v461
        %v490 = vpack.c.bf16 %v464, %v463
        %v491 = vpack.c.bf16 %v466, %v465
        %v492 = vpack.c.bf16 %v468, %v467
        %v493 = vpack.c.bf16 %v470, %v469
        %v494 = vpack.c.bf16 %v472, %v471
        %v495 = vpack.c.bf16 %v474, %v473
        %v496 = vpack.c.bf16 %v476, %v475
        %v497 = vpack.c.bf16 %v478, %v477
        %v498 = vpack.c.bf16 %v480, %v479
        %v499 = vpack.c.bf16 %v482, %v481
        %v500 = vpack.c.bf16 %v484, %v483
        %v501 = vld [vmem:[%s3] sm:$0xf]
        %v502 = vld [vmem:[%s3 + $0x4] sm:$0xf]
        %v503 = vld [vmem:[%s3 + $0x8] sm:$0xf]
        %v504 = vld [vmem:[%s3 + $0xc] sm:$0xf]
        %v509 = vunpack.c.l.b16 %v501
        %v510 = vunpack.c.l.b16 %v502
        %v511 = vunpack.c.l.b16 %v503
        %v512 = vunpack.c.l.b16 %v504
        %v513 = vpack.c.b16 %v510, %v509
        %v514 = vpack.c.b16 %v512, %v511
        %vm517 = vcmask 261120
        %v519 = vsel %vm517, %v485, 0
        %v522 = vsel %vm517, %v486, 0
        %v525 = vsel %vm517, %v487, 0
        %v528 = vsel %vm517, %v488, 0
        %v531 = vsel %vm517, %v489, 0
        %v534 = vsel %vm517, %v490, 0
        %v537 = vsel %vm517, %v491, 0
        %v540 = vsel %vm517, %v492, 0
        %v543 = vsel %vm517, %v493, 0
        %v546 = vsel %vm517, %v494, 0
        %v549 = vsel %vm517, %v495, 0
        %v552 = vsel %vm517, %v496, 0
        %v555 = vsel %vm517, %v497, 0
        %v558 = vsel %vm517, %v498, 0
        %v561 = vsel %vm517, %v499, 0
        %v564 = vsel %vm517, %v500, 0
        %566 = vmatpush.bf16.msra.mxu0 0
        %567 = vmatpush.bf16.msra.mxu0 0
        %568 = vmatpush.bf16.msra.mxu0 0
        %569 = vmatpush.bf16.msra.mxu0 0
        %570 = vmatpush.bf16.msra.mxu0 0
        %571 = vmatpush.bf16.msra.mxu0 0
        %572 = vmatpush.bf16.msra.mxu0 %v514
        %573 = vmatpush.bf16.msra.mxu0 %v513
        %574 = vmatmul.bf16.gmra.mxu0 %v519
        %v575 = vpop.f32.mrf.mxu0
        %v576 = vadd.f32 0.0, %v575
        %v577 = vpop.f32.mrf.mxu0
        %v578 = vadd.f32 0.0, %v577
        %579 = vmatmul.bf16.gmra.mxu0 %v522
        %v580 = vpop.f32.mrf.mxu0
        %v581 = vadd.f32 0.0, %v580
        %v582 = vpop.f32.mrf.mxu0
        %v583 = vadd.f32 0.0, %v582
        %584 = vmatmul.bf16.gmra.mxu0 %v525
        %v585 = vpop.f32.mrf.mxu0
        %v586 = vadd.f32 0.0, %v585
        %v587 = vpop.f32.mrf.mxu0
        %v588 = vadd.f32 0.0, %v587
        %589 = vmatmul.bf16.gmra.mxu0 %v528
        %v590 = vpop.f32.mrf.mxu0
        %v591 = vadd.f32 0.0, %v590
        %v592 = vpop.f32.mrf.mxu0
        %v593 = vadd.f32 0.0, %v592
        %594 = vmatmul.bf16.gmra.mxu0 %v531
        %v595 = vpop.f32.mrf.mxu0
        %v596 = vadd.f32 0.0, %v595
        %v597 = vpop.f32.mrf.mxu0
        %v598 = vadd.f32 0.0, %v597
        %599 = vmatmul.bf16.gmra.mxu0 %v534
        %v600 = vpop.f32.mrf.mxu0
        %v601 = vadd.f32 0.0, %v600
        %v602 = vpop.f32.mrf.mxu0
        %v603 = vadd.f32 0.0, %v602
        %604 = vmatmul.bf16.gmra.mxu0 %v537
        %v605 = vpop.f32.mrf.mxu0
        %v606 = vadd.f32 0.0, %v605
        %v607 = vpop.f32.mrf.mxu0
        %v608 = vadd.f32 0.0, %v607
        %609 = vmatmul.bf16.gmra.mxu0 %v540
        %v610 = vpop.f32.mrf.mxu0
        %v611 = vadd.f32 0.0, %v610
        %v612 = vpop.f32.mrf.mxu0
        %v613 = vadd.f32 0.0, %v612
        %614 = vmatmul.bf16.gmra.mxu0 %v543
        %v615 = vpop.f32.mrf.mxu0
        %v616 = vadd.f32 0.0, %v615
        %v617 = vpop.f32.mrf.mxu0
        %v618 = vadd.f32 0.0, %v617
        %619 = vmatmul.bf16.gmra.mxu0 %v546
        %v620 = vpop.f32.mrf.mxu0
        %v621 = vadd.f32 0.0, %v620
        %v622 = vpop.f32.mrf.mxu0
        %v623 = vadd.f32 0.0, %v622
        %624 = vmatmul.bf16.gmra.mxu0 %v549
        %v625 = vpop.f32.mrf.mxu0
        %v626 = vadd.f32 0.0, %v625
        %v627 = vpop.f32.mrf.mxu0
        %v628 = vadd.f32 0.0, %v627
        %629 = vmatmul.bf16.gmra.mxu0 %v552
        %v630 = vpop.f32.mrf.mxu0
        %v631 = vadd.f32 0.0, %v630
        %v632 = vpop.f32.mrf.mxu0
        %v633 = vadd.f32 0.0, %v632
        %634 = vmatmul.bf16.gmra.mxu0 %v555
        %v635 = vpop.f32.mrf.mxu0
        %v636 = vadd.f32 0.0, %v635
        %v637 = vpop.f32.mrf.mxu0
        %v638 = vadd.f32 0.0, %v637
        %639 = vmatmul.bf16.gmra.mxu0 %v558
        %v640 = vpop.f32.mrf.mxu0
        %v641 = vadd.f32 0.0, %v640
        %v642 = vpop.f32.mrf.mxu0
        %v643 = vadd.f32 0.0, %v642
        %644 = vmatmul.bf16.gmra.mxu0 %v561
        %v645 = vpop.f32.mrf.mxu0
        %v646 = vadd.f32 0.0, %v645
        %v647 = vpop.f32.mrf.mxu0
        %v648 = vadd.f32 0.0, %v647
        %649 = vmatmul.bf16.gmra.mxu0 %v564
        %v650 = vpop.f32.mrf.mxu0
        %v651 = vadd.f32 0.0, %v650
        %v652 = vpop.f32.mrf.mxu0
        %v653 = vadd.f32 0.0, %v652
        %654 = vdwg.mxu0
        %v655 = vadd.f32 %v248, %v576
        %v656 = vadd.f32 %v249, %v578
        %v657 = vadd.f32 %v250, %v581
        %v658 = vadd.f32 %v251, %v583
        %v659 = vadd.f32 %v252, %v586
        %v660 = vadd.f32 %v253, %v588
        %v661 = vadd.f32 %v254, %v591
        %v662 = vadd.f32 %v255, %v593
        %v663 = vadd.f32 %v256, %v596
        %v664 = vadd.f32 %v257, %v598
        %v665 = vadd.f32 %v258, %v601
        %v666 = vadd.f32 %v259, %v603
        %v667 = vadd.f32 %v260, %v606
        %v668 = vadd.f32 %v261, %v608
        %v669 = vadd.f32 %v262, %v611
        %v670 = vadd.f32 %v263, %v613
        %v671 = vadd.f32 %v264, %v616
        %v672 = vadd.f32 %v265, %v618
        %v673 = vadd.f32 %v266, %v621
        %v674 = vadd.f32 %v267, %v623
        %v675 = vadd.f32 %v268, %v626
        %v676 = vadd.f32 %v269, %v628
        %v677 = vadd.f32 %v270, %v631
        %v678 = vadd.f32 %v271, %v633
        %v679 = vadd.f32 %v272, %v636
        %v680 = vadd.f32 %v273, %v638
        %v681 = vadd.f32 %v274, %v641
        %v682 = vadd.f32 %v275, %v643
        %v683 = vadd.f32 %v276, %v646
        %v684 = vadd.f32 %v277, %v648
        %v685 = vadd.f32 %v278, %v651
        %v686 = vadd.f32 %v279, %v653
        %v687 = vld [vmem:[%s4] sm:$0x1]
        %v689 = vperm.slane %v687, 0
        %v691 = vadd.f32 %v655, %v689
        %v692 = vadd.f32 %v656, %v689
        %v693 = vadd.f32 %v657, %v689
        %v694 = vadd.f32 %v658, %v689
        %v695 = vadd.f32 %v659, %v689
        %v696 = vadd.f32 %v660, %v689
        %v697 = vadd.f32 %v661, %v689
        %v698 = vadd.f32 %v662, %v689
        %v699 = vadd.f32 %v663, %v689
        %v700 = vadd.f32 %v664, %v689
        %v701 = vadd.f32 %v665, %v689
        %v702 = vadd.f32 %v666, %v689
        %v703 = vadd.f32 %v667, %v689
        %v704 = vadd.f32 %v668, %v689
        %v705 = vadd.f32 %v669, %v689
        %v706 = vadd.f32 %v670, %v689
        %v707 = vadd.f32 %v671, %v689
        %v708 = vadd.f32 %v672, %v689
        %v709 = vadd.f32 %v673, %v689
        %v710 = vadd.f32 %v674, %v689
        %v711 = vadd.f32 %v675, %v689
        %v712 = vadd.f32 %v676, %v689
        %v713 = vadd.f32 %v677, %v689
        %v714 = vadd.f32 %v678, %v689
        %v715 = vadd.f32 %v679, %v689
        %v716 = vadd.f32 %v680, %v689
        %v717 = vadd.f32 %v681, %v689
        %v718 = vadd.f32 %v682, %v689
        %v719 = vadd.f32 %v683, %v689
        %v720 = vadd.f32 %v684, %v689
        %v721 = vadd.f32 %v685, %v689
        %v722 = vadd.f32 %v686, %v689
        %723 = vst [vmem:[%s244] sm:$0xff] %v691
        %724 = vst [vmem:[%s244 + $0x8] sm:$0xff] %v692
        %725 = vst [vmem:[%s244 + $0x10] sm:$0xff] %v693
        %726 = vst [vmem:[%s244 + $0x18] sm:$0xff] %v694
        %727 = vst [vmem:[%s244 + $0x20] sm:$0xff] %v695
        %728 = vst [vmem:[%s244 + $0x28] sm:$0xff] %v696
        %729 = vst [vmem:[%s244 + $0x30] sm:$0xff] %v697
        %730 = vst [vmem:[%s244 + $0x38] sm:$0xff] %v698
        %731 = vst [vmem:[%s244 + $0x40] sm:$0xff] %v699
        %732 = vst [vmem:[%s244 + $0x48] sm:$0xff] %v700
        %733 = vst [vmem:[%s244 + $0x50] sm:$0xff] %v701
        %734 = vst [vmem:[%s244 + $0x58] sm:$0xff] %v702
        %735 = vst [vmem:[%s244 + $0x60] sm:$0xff] %v703
        %736 = vst [vmem:[%s244 + $0x68] sm:$0xff] %v704
        %737 = vst [vmem:[%s244 + $0x70] sm:$0xff] %v705
        %738 = vst [vmem:[%s244 + $0x78] sm:$0xff] %v706
        %739 = vst [vmem:[%s244 + $0x80] sm:$0xff] %v707
        %740 = vst [vmem:[%s244 + $0x88] sm:$0xff] %v708
        %741 = vst [vmem:[%s244 + $0x90] sm:$0xff] %v709
        %742 = vst [vmem:[%s244 + $0x98] sm:$0xff] %v710
        %743 = vst [vmem:[%s244 + $0xa0] sm:$0xff] %v711
        %744 = vst [vmem:[%s244 + $0xa8] sm:$0xff] %v712
        %745 = vst [vmem:[%s244 + $0xb0] sm:$0xff] %v713
        %746 = vst [vmem:[%s244 + $0xb8] sm:$0xff] %v714
        %747 = vst [vmem:[%s244 + $0xc0] sm:$0xff] %v715
        %748 = vst [vmem:[%s244 + $0xc8] sm:$0xff] %v716
        %749 = vst [vmem:[%s244 + $0xd0] sm:$0xff] %v717
        %750 = vst [vmem:[%s244 + $0xd8] sm:$0xff] %v718
        %751 = vst [vmem:[%s244 + $0xe0] sm:$0xff] %v719
        %752 = vst [vmem:[%s244 + $0xe8] sm:$0xff] %v720
        %753 = vst [vmem:[%s244 + $0xf0] sm:$0xff] %v721
        %754 = vst [vmem:[%s244 + $0xf8] sm:$0xff] %v722
        %s755 = sand.u32 %s140, 1
        %s756 = scalar_lea.sflag [#allocation4], %s755
        %s757 = sand.u32 %s140, 1
        %s758 = smul.addr %s757, 256
        %s759 = scalar_lea.vmem [#allocation5], %s758
        // Predicated region
        $region45: #{tpu_custom_call.1} parent=39 // pred_check
          %p760 = pneg %p150
        $region46: #{tpu_custom_call.1} parent=39 // pred_check_branch
          %762 = sbr.rel (%p760) target = $region48
        $region47: #{tpu_custom_call.1} parent=39 // pred_region
          %s763 = smul.u32 32, %s22
          %765 = vsyncadd %s756, 0
          %s766 = smul.addr %s763, 8
          %s767 = scalar_lea.hbm %s5, %s766
          %s768 = sshll.u32 %s759, 4
          %s769 = int_to_ptr.vmem [resolvable:$true] %s768
          %s770 = sshll.u32 %s767, 4
          %s771 = int_to_ptr.hbm [resolvable:$true] %s770
          %776 = dma.vmem_to_hbm [thread:$0]  %s769, 4096, %s771, %s756, 128, 128, 8
        $region48: #{tpu_custom_call.1} parent=39 // pred_fallthru
          _
      $region40: #{tpu_custom_call.1} parent=5 // pred_fallthru
        _
      %p777 = scmp.le.s32.totalorder 2, %s17
      // Predicated region
      $region49: #{tpu_custom_call.1} parent=5 // pred_check
        %p778 = pneg %p777
      $region50: #{tpu_custom_call.1} parent=5 // pred_check_branch
        %780 = sbr.rel (%p778) target = $region52
      $region51: #{tpu_custom_call.1} parent=5 // pred_region
        %s781 = ssub.s32 %s17, 2
        // Predicated region
        $region53: #{tpu_custom_call.1} parent=51 // pred_check
          %p782 = pneg %p156
        $region54: #{tpu_custom_call.1} parent=51 // pred_check_branch
          %784 = sbr.rel (%p782) target = $region56
        $region55: #{tpu_custom_call.1} parent=51 // pred_region
          %s785 = sand.u32 %s141, 1
          %s786 = scalar_lea.sflag [#allocation4], %s785
          %s787 = sand.u32 %s141, 1
          %s788 = smul.addr %s787, 256
          %s789 = scalar_lea.vmem [#allocation5], %s788
          %791 = dma.done %s786, 4096
        $region56: #{tpu_custom_call.1} parent=51 // pred_fallthru
          _
      $region52: #{tpu_custom_call.1} parent=5 // pred_fallthru
        _
    $region6: #{tpu_custom_call.1} parent=1 // loop_footer
      %s21 = sadd.s32 1, %s17
    $region7: #{tpu_custom_call.1} parent=1 // loop_footer_branch
      %16 = sbr.rel target = $region3
    $region8: #{tpu_custom_call.1} parent=1 // loop_exit
      _
    %792 = vsyncpa [#allocation3], 1
    %s793 = scalar_lea.sflag [#allocation3], 1
    %794 = vsyncpa %s793, 1
    %795 = vsyncpa [#allocation4], 1
    %s796 = scalar_lea.sflag [#allocation4], 1
    %797 = vsyncpa %s796, 1

</llo_original>
